<compile_context>
chip_gen: v5e
topology: v5e:2x2
jax: 0.10.0
libtpu: 0.0.40
codegen_flags: <defaults>
</compile_context>

<pallas_src>
import functools

import jax
import jax.numpy as jnp
from jax.experimental import pallas as pl
from jax.experimental.pallas import tpu as pltpu

EPS = 1e-5
_VMEM_LIMIT = 32 * 1024 * 1024        # safe on v5e/v6e (128 MiB) and v7x (64 MiB physical)
_MM_VMEM_BUDGET = 12 * 1024 * 1024    # target per-call tile footprint (double-buffered)


def _round_up(x, m):
    return (x + m - 1) // m * m


@functools.lru_cache(None)
def _mxu_tile():
    # 256-wide output tiles for the 256x256 MXUs (v6e / v7x); 128 for v5e & older.
    try:
        kind = jax.devices()[0].device_kind.lower()
    except Exception:
        return 128
    if any(t in kind for t in ("v2", "v3", "v4", "v5")):
        return 128
    return 256


# --------------------------------------------------------------------------
# Pallas tiled matmul (conv-as-im2col / fc hot path), bf16 in / f32 accumulate
# --------------------------------------------------------------------------
def _mm_acc_kernel(a_ref, b_ref, o_ref, acc_ref, *, k_true, mask_k):
    k = pl.program_id(2)

    @pl.when(k == 0)
    def _():
        acc_ref[...] = jnp.zeros_like(acc_ref)

    a = a_ref[...]
    if mask_k:
        # Last K block is ragged: zero the garbage lanes read past the true K.
        col = jax.lax.broadcasted_iota(jnp.int32, a.shape, 1) + k * a.shape[1]
        a = jnp.where(col < k_true, a, jnp.zeros_like(a))

    acc_ref[...] += jnp.dot(a, b_ref[...], preferred_element_type=jnp.float32)

    @pl.when(k == pl.num_programs(2) - 1)
    def _():
        o_ref[...] = acc_ref[...].astype(o_ref.dtype)


def _mm_simple_kernel(a_ref, b_ref, o_ref, *, k_true, mask_k):
    # Single K block: no accumulator scratch, no pl.when phases.
    a = a_ref[...]
    if mask_k:
        col = jax.lax.broadcasted_iota(jnp.int32, a.shape, 1)
        a = jnp.where(col < k_true, a, jnp.zeros_like(a))
    o_ref[...] = jnp.dot(a, b_ref[...],
                         preferred_element_type=jnp.float32).astype(o_ref.dtype)


def pallas_matmul(a, b, out_dtype=jnp.float32):
    """a: (M, K), b: (K, N) -> (M, N) in out_dtype. MXU runs in bf16/f32-acc."""
    M, K = a.shape
    K2, N = b.shape
    assert K == K2
    a = a.astype(jnp.bfloat16)
    b = b.astype(jnp.bfloat16)

    out_bytes = jnp.dtype(out_dtype).itemsize
    tm = min(_mxu_tile(), _round_up(M, 16))
    tn = min(_round_up(N, 128), 2048)        # cover OC: big A matrix read once
    tk = min(_round_up(K, 128), 2048)

    def _fp(tk_, tn_):
        return (2 * (tm * tk_ + tk_ * tn_) * 2   # double-buffered bf16 inputs
                + tm * tn_ * 4                   # f32 accumulator
                + 2 * tm * tn_ * out_bytes)      # double-buffered output

    while _fp(tk, tn) > _MM_VMEM_BUDGET and tk > 256:
        tk = _round_up(tk // 2, 128)
    while _fp(tk, tn) > _MM_VMEM_BUDGET and tn > 256:
        tn = _round_up(tn // 2, 128)

    nk = pl.cdiv(K, tk)
    tk = min(tk, _round_up(-(-K // nk), 128))    # even K split, less weight padding
    nk = pl.cdiv(K, tk)
    ni, nj = pl.cdiv(M, tm), pl.cdiv(N, tn)

    # Only the small weight matrix is padded (K dim) -- never the big activation.
    Kp = nk * tk
    if Kp != K:
        b = jnp.pad(b, ((0, Kp - K), (0, 0)))
    mask_k = (K % tk) != 0

    cost = pl.CostEstimate(flops=2 * M * N * K, transcendentals=0,
                           bytes_accessed=M * K * 2 + Kp * N * 2 + M * N * out_bytes)

    if nk == 1:
        return pl.pallas_call(
            functools.partial(_mm_simple_kernel, k_true=K, mask_k=mask_k),
            out_shape=jax.ShapeDtypeStruct((M, N), out_dtype),
            grid_spec=pltpu.PrefetchScalarGridSpec(
                num_scalar_prefetch=0,
                grid=(ni, nj),
                in_specs=[pl.BlockSpec((tm, tk), lambda i, j: (i, 0)),
                          pl.BlockSpec((tk, tn), lambda i, j: (0, j))],
                out_specs=pl.BlockSpec((tm, tn), lambda i, j: (i, j))),
            compiler_params=pltpu.CompilerParams(
                dimension_semantics=("parallel", "parallel"),
                vmem_limit_bytes=_VMEM_LIMIT),
            cost_estimate=cost,
        )(a, b)

    return pl.pallas_call(
        functools.partial(_mm_acc_kernel, k_true=K, mask_k=mask_k),
        out_shape=jax.ShapeDtypeStruct((M, N), out_dtype),
        grid_spec=pltpu.PrefetchScalarGridSpec(
            num_scalar_prefetch=0,
            grid=(ni, nj, nk),
            in_specs=[pl.BlockSpec((tm, tk), lambda i, j, k: (i, k)),
                      pl.BlockSpec((tk, tn), lambda i, j, k: (k, j))],
            out_specs=pl.BlockSpec((tm, tn), lambda i, j, k: (i, j)),
            scratch_shapes=[pltpu.VMEM((tm, tn), jnp.float32)]),
        compiler_params=pltpu.CompilerParams(
            dimension_semantics=("parallel", "parallel", "arbitrary"),
            vmem_limit_bytes=_VMEM_LIMIT),
        cost_estimate=cost,
    )(a, b)


# --------------------------------------------------------------------------
# Fused training-mode BatchNorm, tiled two-pass:
#   pass 1: per-channel sum / sum-sq reduced over the row grid axis
#   pass 2: normalize (+ optional residual add, + optional ReLU)
# --------------------------------------------------------------------------
def _bn_stats_kernel(x_ref, mean_ref, inv_ref, sum_sc, sq_sc, *, rows, tr, mask_rows):
    ri = pl.program_id(1)

    @pl.when(ri == 0)
    def _():
        sum_sc[...] = jnp.zeros_like(sum_sc)
        sq_sc[...] = jnp.zeros_like(sq_sc)

    x = x_ref[...].astype(jnp.float32)
    if mask_rows:
        ridx = jax.lax.broadcasted_iota(jnp.int32, x.shape, 0) + ri * tr
        x = jnp.where(ridx < rows, x, 0.0)

    sum_sc[...] += jnp.sum(x, axis=0, keepdims=True)
    sq_sc[...] += jnp.sum(x * x, axis=0, keepdims=True)

    @pl.when(ri == pl.num_programs(1) - 1)
    def _():
        m = sum_sc[...] * (1.0 / rows)
        var = sq_sc[...] * (1.0 / rows) - m * m
        mean_ref[...] = m
        inv_ref[...] = jax.lax.rsqrt(jnp.maximum(var, 0.0) + EPS)


def _bn_apply_kernel(*refs, relu, has_res):
    if has_res:
        x_ref, mean_ref, inv_ref, g_ref, b_ref, r_ref, o_ref = refs
    else:
        x_ref, mean_ref, inv_ref, g_ref, b_ref, o_ref = refs
        r_ref = None
    x = x_ref[...].astype(jnp.float32)
    y = (x - mean_ref[...]) * (inv_ref[...] * g_ref[...]) + b_ref[...]
    if r_ref is not None:
        y = y + r_ref[...].astype(jnp.float32)
    if relu:
        y = jnp.maximum(y, 0.0)
    o_ref[...] = y.astype(o_ref.dtype)


def pallas_batchnorm(x2d, gamma, beta, residual=None, relu=True,
                     out_dtype=jnp.float32):
    """x2d: (R, C). Training-mode BN per column over the R axis, tiled."""
    R, C = x2d.shape
    tr = min(_round_up(R, 16), 1024)
    tc = min(_round_up(C, 128), 512)
    nr, nc = pl.cdiv(R, tr), pl.cdiv(C, tc)

    g = gamma.reshape(1, C).astype(jnp.float32)
    bt = beta.reshape(1, C).astype(jnp.float32)

    mean, inv = pl.pallas_call(
        functools.partial(_bn_stats_kernel, rows=R, tr=tr, mask_rows=(R % tr != 0)),
        out_shape=(jax.ShapeDtypeStruct((1, C), jnp.float32),
                   jax.ShapeDtypeStruct((1, C), jnp.float32)),
        grid_spec=pltpu.PrefetchScalarGridSpec(
            num_scalar_prefetch=0,
            grid=(nc, nr),
            in_specs=[pl.BlockSpec((tr, tc), lambda c, r: (r, c))],
            out_specs=(pl.BlockSpec((1, tc), lambda c, r: (0, c)),
                       pl.BlockSpec((1, tc), lambda c, r: (0, c))),
            scratch_shapes=[pltpu.VMEM((1, tc), jnp.float32),
                            pltpu.VMEM((1, tc), jnp.float32)]),
        compiler_params=pltpu.CompilerParams(
            dimension_semantics=("parallel", "arbitrary"),
            vmem_limit_bytes=_VMEM_LIMIT),
    )(x2d)

    has_res = residual is not None
    col_spec = lambda: pl.BlockSpec((1, tc), lambda r, c: (0, c))
    tile_spec = lambda: pl.BlockSpec((tr, tc), lambda r, c: (r, c))
    inputs = [x2d, mean, inv, g, bt]
    in_specs = [tile_spec(), col_spec(), col_spec(), col_spec(), col_spec()]
    if has_res:
        inputs.append(residual)
        in_specs.append(tile_spec())

    # TODO(synk): for C < 128 (conv1, small heads) the output lanes are not
    # dense; folding spatial into the lane axis would avoid masked stores.
    return pl.pallas_call(
        functools.partial(_bn_apply_kernel, relu=relu, has_res=has_res),
        out_shape=jax.ShapeDtypeStruct((R, C), out_dtype),
        grid_spec=pltpu.PrefetchScalarGridSpec(
            num_scalar_prefetch=0,
            grid=(nr, nc),
            in_specs=in_specs,
            out_specs=pl.BlockSpec((tr, tc), lambda r, c: (r, c))),
        compiler_params=pltpu.CompilerParams(
            dimension_semantics=("parallel", "parallel"),
            vmem_limit_bytes=_VMEM_LIMIT),
    )(*inputs)


# --------------------------------------------------------------------------
# Conv = im2col (bf16, JAX glue) + Pallas matmul, then fused tiled BN
# --------------------------------------------------------------------------
def _im2col(x, kh, kw, stride, pad):
    # TODO(synk): fold the kh*kw taps into a matmul grid axis (manual DMA of
    # shifted activation windows) to avoid materializing the 9x im2col matrix
    # in HBM for 3x3 convs; for 1x1 convs this path is already just a reshape.
    N, H, W, C = x.shape
    xp = jnp.pad(x, ((0, 0), (pad, pad), (pad, pad), (0, 0)))
    OH = (H + 2 * pad - kh) // stride + 1
    OW = (W + 2 * pad - kw) // stride + 1
    cols = []
    for i in range(kh):
        for j in range(kw):
            patch = jax.lax.slice(
                xp, (0, i, j, 0),
                (N, i + (OH - 1) * stride + 1, j + (OW - 1) * stride + 1, C),
                (1, stride, stride, 1))
            cols.append(patch)
    cols = cols[0] if len(cols) == 1 else jnp.concatenate(cols, axis=-1)
    return cols.reshape(N * OH * OW, kh * kw * C), (N, OH, OW)


def conv_bn(x, w, bn, *, stride=1, pad=0, relu=True, residual=None):
    kh, kw, ic, oc = w.shape
    cols, (N, OH, OW) = _im2col(x.astype(jnp.bfloat16), kh, kw, stride, pad)
    y = pallas_matmul(cols, w.reshape(kh * kw * ic, oc), out_dtype=jnp.bfloat16)
    res = None if residual is None else residual.reshape(N * OH * OW, oc)
    gamma, beta = bn
    y = pallas_batchnorm(y, gamma, beta, residual=res, relu=relu,
                         out_dtype=jnp.bfloat16)
    return y.reshape(N, OH, OW, oc)


def maxpool_3x3_s2_p1(x):
    # TODO(synk): window max-pool stays on lax.reduce_window (tiny op, no clean
    # Pallas win); -inf padding matches PyTorch semantics.
    return jax.lax.reduce_window(
        x, jnp.array(-jnp.inf, x.dtype), jax.lax.max,
        window_dimensions=(1, 3, 3, 1), window_strides=(1, 2, 2, 1),
        padding=((0, 0), (1, 1), (1, 1), (0, 0)))


# --------------------------------------------------------------------------
# ResNet-50 parameter init (synthetic, deterministic)
# --------------------------------------------------------------------------
class KeyGen:
    def __init__(self, seed):
        self._key = jax.random.PRNGKey(seed)

    def __call__(self):
        self._key, k = jax.random.split(self._key)
        return k


def conv_w(kg, kh, kw, ic, oc):
    fan_in = kh * kw * ic
    return (jax.random.normal(kg(), (kh, kw, ic, oc))
            * (2.0 / fan_in) ** 0.5).astype(jnp.float32)


def bn_p(kg, c):
    gamma = (1.0 + 0.1 * jax.random.normal(kg(), (c,))).astype(jnp.float32)
    beta = (0.1 * jax.random.normal(kg(), (c,))).astype(jnp.float32)
    return gamma, beta


def _init_bottleneck(kg, inplanes, planes, stride, downsample):
    p = {
        'w1': conv_w(kg, 1, 1, inplanes, planes), 'bn1': bn_p(kg, planes),
        'w2': conv_w(kg, 3, 3, planes, planes), 'bn2': bn_p(kg, planes),
        'w3': conv_w(kg, 1, 1, planes, planes * 4), 'bn3': bn_p(kg, planes * 4),
        'stride': stride,
    }
    if downsample:
        p['wd'] = conv_w(kg, 1, 1, inplanes, planes * 4)
        p['bnd'] = bn_p(kg, planes * 4)
    return p


def init_sdnet(seed, num_vectors):
    kg = KeyGen(seed)
    params = {'conv1': conv_w(kg, 7, 7, 3, 64), 'bn1': bn_p(kg, 64)}
    inplanes = 64
    layers = []
    for planes, blocks, stride in ((64, 3, 1), (128, 4, 2), (256, 6, 2), (512, 3, 2)):
        blocks_p = []
        for b in range(blocks):
            s = stride if b == 0 else 1
            ds = (b == 0) and (s != 1 or inplanes != planes * 4)
            blocks_p.append(_init_bottleneck(kg, inplanes, planes, s, ds))
            inplanes = planes * 4
        layers.append(blocks_p)
    params['layers'] = layers
    params['fc_w'] = (jax.random.normal(kg(), (2048, num_vectors))
                      * (1.0 / 2048 ** 0.5)).astype(jnp.float32)
    params['fc_b'] = (0.01 * jax.random.normal(kg(), (num_vectors,))).astype(jnp.float32)
    params['bn_head'] = bn_p(kg, num_vectors)
    return params


# --------------------------------------------------------------------------
# Forward
# --------------------------------------------------------------------------
def _bottleneck_forward(x, p):
    identity = x
    out = conv_bn(x, p['w1'], p['bn1'], stride=1, pad=0, relu=True)
    out = conv_bn(out, p['w2'], p['bn2'], stride=p['stride'], pad=1, relu=True)
    if 'wd' in p:
        identity = conv_bn(x, p['wd'], p['bnd'], stride=p['stride'], pad=0,
                           relu=False)
    # BN -> +identity -> ReLU fused in one normalize pass (matches PyTorch order)
    out = conv_bn(out, p['w3'], p['bn3'], stride=1, pad=0, relu=True,
                  residual=identity)
    return out


def sdnet_forward(params, x_nchw):
    # NCHW (PyTorch) -> NHWC internal layout
    x = jnp.transpose(x_nchw, (0, 2, 3, 1)).astype(jnp.float32)
    x = conv_bn(x, params['conv1'], params['bn1'], stride=2, pad=3, relu=True)
    x = maxpool_3x3_s2_p1(x)
    for layer in params['layers']:
        for bp in layer:
            x = _bottleneck_forward(x, bp)
    x = jnp.mean(x.astype(jnp.float32), axis=(1, 2))          # adaptive avg pool -> (N, 2048)
    x = pallas_matmul(x, params['fc_w'], out_dtype=jnp.float32) + params['fc_b']
    gamma, beta = params['bn_head']                            # BatchNorm1d head
    x = pallas_batchnorm(x, gamma, beta, residual=None, relu=False,
                         out_dtype=jnp.float32)
    return x


if __name__ == "__main__":
    num_vectors = 32   # small stand-in for the default 1000
    params = init_sdnet(0, num_vectors)
    x = jax.random.normal(jax.random.PRNGKey(0), (2, 3, 32, 32), jnp.float32)
    out = sdnet_forward(params, x)
    out = jax.block_until_ready(out)
    assert out.shape == (2, num_vectors)
    assert bool(jnp.all(jnp.isfinite(out)))
    print("KERNEL_OK")
</pallas_src>

<mosaic_0001>
module attributes {stable_mosaic.version = 11 : i64} {
  func.func @_mm_simple_kernel(%arg0: i32, %arg1: i32, %arg2: memref<256x256xbf16, #tpu.memory_space<vmem>>, %arg3: memref<256x128xbf16, #tpu.memory_space<vmem>>, %arg4: memref<256x128xbf16, #tpu.memory_space<vmem>>) attributes {dimension_semantics = [#tpu.dimension_semantics<parallel>, #tpu.dimension_semantics<parallel>], iteration_bounds = array<i64: 2, 1>, scalar_prefetch = 0 : i64, scratch_operands = 0 : i64, tpu.core_type = #tpu.core_type<tc>, window_params = [{transform_indices = @transform_0, window_bounds = array<i64: 256, 256>}, {transform_indices = @transform_1, window_bounds = array<i64: 256, 128>}, {transform_indices = @transform_2, window_bounds = array<i64: 256, 128>}]} {
    %c0 = arith.constant 0 : index
    %c0_0 = arith.constant 0 : index
    %0 = vector.load %arg2[%c0, %c0_0] : memref<256x256xbf16, #tpu.memory_space<vmem>>, vector<256x256xbf16>
    %1 = tpu.iota {dimensions = array<i32: 1>} : vector<256x256xi32>
    %c147_i32 = arith.constant 147 : i32
    %2 = vector.broadcast %c147_i32 : i32 to vector<256x256xi32>
    %3 = arith.cmpi slt, %1, %2 : vector<256x256xi32>
    %cst = arith.constant 0.000000e+00 : bf16
    %4 = vector.broadcast %cst : bf16 to vector<256x256xbf16>
    %5 = arith.select %3, %0, %4 : vector<256x256xi1>, vector<256x256xbf16>
    %c0_1 = arith.constant 0 : index
    %c0_2 = arith.constant 0 : index
    %6 = vector.load %arg3[%c0_1, %c0_2] : memref<256x128xbf16, #tpu.memory_space<vmem>>, vector<256x128xbf16>
    %cst_3 = arith.constant dense<0.000000e+00> : vector<256x128xf32>
    %7 = tpu.matmul %5, %6, %cst_3 {dimension_numbers = #tpu.dot_dimension_numbers<[1], [0], [0], [1], [0, 0, 1, 1], [], []>} : vector<256x256xbf16>, vector<256x128xbf16>, vector<256x128xf32> -> vector<256x128xf32>
    %8 = arith.truncf %7 : vector<256x128xf32> to vector<256x128xbf16>
    %c0_4 = arith.constant 0 : index
    %c0_5 = arith.constant 0 : index
    %9 = vector.load %arg4[%c0_4, %c0_5] : memref<256x128xbf16, #tpu.memory_space<vmem>>, vector<256x128xbf16>
    tpu.vector_store %arg4[%c0_4, %c0_5], %8 {strides = array<i32>} : memref<256x128xbf16, #tpu.memory_space<vmem>>, vector<256x128xbf16>,
    return
  }
  func.func @transform_0(%arg0: i32, %arg1: i32) -> (i32, i32) {
    %c0_i32 = arith.constant 0 : i32
    %c0_i32_0 = arith.constant 0 : i32
    return %arg0, %c0_i32 : i32, i32
  }
  func.func @transform_1(%arg0: i32, %arg1: i32) -> (i32, i32) {
    %c0_i32 = arith.constant 0 : i32
    %c0_i32_0 = arith.constant 0 : i32
    return %c0_i32, %arg1 : i32, i32
  }
  func.func @transform_2(%arg0: i32, %arg1: i32) -> (i32, i32) {
    %c0_i32 = arith.constant 0 : i32
    return %arg0, %arg1 : i32, i32
  }
}

</mosaic_0001>

<llo_original>
// kernel: tpu_custom_call.1
$region0: #{tpu_custom_call.1}
  #allocation0 [shape = 'u32[]', space=smem, size = 0x4, offset = 0x4, fixed_abs, tag = 'smem constant byte address 0x4 - core index']
  #allocation1 [shape = 'u32[72,128]{1,0:T(1,128)}', space=vmem, size = 0x9000, scoped, tag = 'internal scratch']
  %s0 = inlined_call_operand.vmem [shape: bf16[512,147], index: 0, kind: input, shape index: {}]
  %s1 = inlined_call_operand.vmem [shape: bf16[256,64], index: 1, kind: input, shape index: {}]
  %s2 = inlined_call_operand.vmem [shape: bf16[512,64], index: 2, kind: output, shape index: {}]
  %s3 = sld [smem:[#allocation0]]
  $region41: #{tpu_custom_call.1} parent=0
    _
  %s5 = ssub.s32 1, %s3
  %s6 = scalar_select 0, %s5, %s3
  loop: start=0, step=1, limit=4
  $region2: #{tpu_custom_call.1} parent=0 // loop_pre_header
    _
  $region3: #{tpu_custom_call.1} parent=0 // loop_header
    %s8 = sphi 0, %s12
    %p9 = scmp.ge.s32.totalorder %s8, 4
    %s15 = sphi 0, %s27
    %s16 = sphi 0, %s23
    %s17 = sphi 0, %s15
    %s18 = sphi 0, %s16
    %s19 = sphi 0, %s17
    %s20 = sphi 0, %s18
    %s30 = sphi 0, %s32
    %s33 = sphi 0, %s30
    %s34 = sphi 0, %s33
    %s50 = sphi 0, %s34
    %s56 = sphi 0, %s58
    %s59 = sphi 0, %s56
    %s60 = sphi 0, %s59
    %s76 = sphi 0, %s60
    %s84 = sphi 0, %s86
    %s87 = sphi 0, %s84
    %s88 = sphi 0, %s87
    %s104 = sphi 0, %s88
  $region4: #{tpu_custom_call.1} parent=0 // loop_header_branch
    %11 = sbr.rel (%p9) target = $region8
  $region5: #{tpu_custom_call.1} parent=0 // loop_body
    %s13 = ssub.s32 %s8, 1
    %s14 = ssub.s32 %s8, 2
    %s21 = sadd.s32 1, %s16
    %p22 = scmp.ge.s32.totalorder %s21, 1
    %s23 = scalar_select %p22, 0, %s21
    %s24 = sadd.s32 1, %s15
    %s25 = scalar_select %p22, %s24, %s15
    %p26 = scmp.ge.s32.totalorder %s25, 2
    %s27 = scalar_select %p26, 0, %s25
    %s28 = ssub.s32 %s15, %s27
    %p29 = scmp.eq.s32.totalorder %s28, 0
    %s31 = sadd.s32 %s30, 1
    %s32 = scalar_select %p29, %s30, %s31
    %p35 = pneg %p29
    %p36 = scmp.eq.s32.totalorder %s8, 1
    %p37 = por %p35, %p36
    %p38 = scmp.ne.s32.totalorder %s30, %s33
    %p39 = scmp.eq.s32.totalorder %s8, 0
    %p40 = por %p38, %p39
    %p41 = scmp.ne.s32.totalorder %s30, %s33
    %p42 = scmp.eq.s32.totalorder %s13, 1
    %p43 = por %p41, %p42
    %p44 = scmp.ne.s32.totalorder %s33, %s34
    %p45 = scmp.eq.s32.totalorder %s13, 0
    %p46 = por %p44, %p45
    %p47 = scmp.ne.s32.totalorder %s33, %s34
    %p48 = scmp.eq.s32.totalorder %s14, 1
    %p49 = por %p47, %p48
    %p51 = scmp.ne.s32.totalorder %s34, %s50
    %p52 = scmp.eq.s32.totalorder %s14, 0
    %p53 = por %p51, %p52
    %s54 = ssub.s32 %s16, %s23
    %p55 = scmp.eq.s32.totalorder %s54, 0
    %s57 = sadd.s32 %s56, 1
    %s58 = scalar_select %p55, %s56, %s57
    %p61 = pneg %p55
    %p62 = scmp.eq.s32.totalorder %s8, 1
    %p63 = por %p61, %p62
    %p64 = scmp.ne.s32.totalorder %s56, %s59
    %p65 = scmp.eq.s32.totalorder %s8, 0
    %p66 = por %p64, %p65
    %p67 = scmp.ne.s32.totalorder %s56, %s59
    %p68 = scmp.eq.s32.totalorder %s13, 1
    %p69 = por %p67, %p68
    %p70 = scmp.ne.s32.totalorder %s59, %s60
    %p71 = scmp.eq.s32.totalorder %s13, 0
    %p72 = por %p70, %p71
    %p73 = scmp.ne.s32.totalorder %s59, %s60
    %p74 = scmp.eq.s32.totalorder %s14, 1
    %p75 = por %p73, %p74
    %p77 = scmp.ne.s32.totalorder %s60, %s76
    %p78 = scmp.eq.s32.totalorder %s14, 0
    %p79 = por %p77, %p78
    %s80 = ssub.s32 %s15, %s27
    %s81 = ssub.s32 %s16, %s23
    %s82 = sor.u32 %s80, %s81
    %p83 = scmp.eq.s32.totalorder %s82, 0
    %s85 = sadd.s32 %s84, 1
    %s86 = scalar_select %p83, %s84, %s85
    %p89 = pneg %p83
    %p90 = scmp.eq.s32.totalorder %s8, 1
    %p91 = por %p89, %p90
    %p92 = scmp.ne.s32.totalorder %s84, %s87
    %p93 = scmp.eq.s32.totalorder %s8, 0
    %p94 = por %p92, %p93
    %p95 = scmp.ne.s32.totalorder %s84, %s87
    %p96 = scmp.eq.s32.totalorder %s13, 1
    %p97 = por %p95, %p96
    %p98 = scmp.ne.s32.totalorder %s87, %s88
    %p99 = scmp.eq.s32.totalorder %s13, 0
    %p100 = por %p98, %p99
    %p101 = scmp.ne.s32.totalorder %s87, %s88
    %p102 = scmp.eq.s32.totalorder %s14, 1
    %p103 = por %p101, %p102
    %p105 = scmp.ne.s32.totalorder %s88, %s104
    %p106 = scmp.eq.s32.totalorder %s14, 0
    %p107 = por %p105, %p106
    %p108 = scmp.le.s32.totalorder 1, %s8
    %p109 = scmp.lt.s32.totalorder %s8, 3
    %p110 = pnand %p108, %p109
    %p111 = pneg %p110
    // Predicated region
    $region9: #{tpu_custom_call.1} parent=5 // pred_check
      _
    $region10: #{tpu_custom_call.1} parent=5 // pred_check_branch
      %113 = sbr.rel (%p110) target = $region12
    $region11: #{tpu_custom_call.1} parent=5 // pred_region
      %s114 = ssub.s32 %s8, 1
      // Predicated region
      $region13: #{tpu_custom_call.1} parent=11 // pred_check
        %p115 = pneg %p72
      $region14: #{tpu_custom_call.1} parent=11 // pred_check_branch
        %117 = sbr.rel (%p115) target = $region16
      $region15: #{tpu_custom_call.1} parent=11 // pred_region
        %p118 = scmp.lt.s32.totalorder %s18, 0
        %s119 = scalar_select %p118, %s18, 0
        %s120 = smul.addr %s119, 4
        %s121 = scalar_lea.vmem %s1, %s120
      $region16: #{tpu_custom_call.1} parent=11 // pred_fallthru
        _
    $region12: #{tpu_custom_call.1} parent=5 // pred_fallthru
      _
    %p122 = scmp.lt.s32.totalorder %s8, 2
    // Predicated region
    $region17: #{tpu_custom_call.1} parent=5 // pred_check
      %p123 = pneg %p122
    $region18: #{tpu_custom_call.1} parent=5 // pred_check_branch
      %125 = sbr.rel (%p123) target = $region20
    $region19: #{tpu_custom_call.1} parent=5 // pred_region
      // Predicated region
      $region21: #{tpu_custom_call.1} parent=19 // pred_check
        %p126 = pneg %p40
      $region22: #{tpu_custom_call.1} parent=19 // pred_check_branch
        %128 = sbr.rel (%p126) target = $region24
      $region23: #{tpu_custom_call.1} parent=19 // pred_region
        %s129 = smul.u32 32, %s15
        %p130 = scmp.lt.s32.totalorder %s129, 63
        %s131 = scalar_select %p130, %s129, 63
        %s132 = smul.addr %s131, 2
        %s133 = smul.addr %s132, 4
        %s134 = scalar_lea.vmem %s0, %s133
        %s135 = smul.u32 32, %s15
      $region24: #{tpu_custom_call.1} parent=19 // pred_fallthru
        _
    $region20: #{tpu_custom_call.1} parent=5 // pred_fallthru
      _
    %p136 = scmp.le.s32.totalorder 1, %s8
    %p137 = scmp.lt.s32.totalorder %s8, 3
    %p138 = pnand %p136, %p137
    %p139 = pneg %p138
    // Predicated region
    $region25: #{tpu_custom_call.1} parent=5 // pred_check
      _
    $region26: #{tpu_custom_call.1} parent=5 // pred_check_branch
      %141 = sbr.rel (%p138) target = $region28
    $region27: #{tpu_custom_call.1} parent=5 // pred_region
      %s142 = ssub.s32 %s8, 1
      %s143 = smul.u32 32, %s17
      %p144 = scmp.lt.s32.totalorder %s143, 63
      %s145 = scalar_select %p144, %s143, 63
      %s146 = smul.addr %s145, 2
      %s147 = smul.addr %s146, 4
      %s148 = scalar_lea.vmem %s0, %s147
      %p149 = pneg %p46
      %p150 = pneg %p43
      %p151 = scmp.lt.s32.totalorder %s18, 0
      %s152 = scalar_select %p151, %s18, 0
      %s153 = smul.addr %s152, 4
      %s154 = scalar_lea.vmem %s1, %s153
      %p155 = pneg %p72
      %p156 = pneg %p69
      %p157 = pneg %p100
      %p158 = pneg %p97
      %s159 = smul.u32 32, %s17
      %p160 = scmp.lt.s32.totalorder %s159, 63
      %s161 = scalar_select %p160, %s159, 63
      %p162 = scmp.lt.s32.totalorder %s18, 0
      %s163 = scalar_select %p162, %s18, 0
      %s164 = sadd.s32 %s163, %s161
      %s165 = smul.addr %s164, 4
      %s166 = scalar_lea.vmem %s2, %s165
      %s167 = smul.u32 32, %s17
      %p168 = scmp.lt.s32.totalorder %s167, 63
      %s169 = scalar_select %p168, %s167, 63
      %s170 = smul.addr %s169, 2
      %s171 = smul.addr %s170, 4
      %s172 = scalar_lea.vmem %s0, %s171
      %s173 = smul.u32 32, %s17
      %p174 = scmp.lt.s32.totalorder %s18, 0
      %s175 = scalar_select %p174, %s18, 0
      %s176 = smul.addr %s175, 4
      %s177 = scalar_lea.vmem %s1, %s176
      %s178 = smul.u32 32, %s17
      %p179 = scmp.lt.s32.totalorder %s178, 63
      %s180 = scalar_select %p179, %s178, 63
      %p181 = scmp.lt.s32.totalorder %s18, 0
      %s182 = scalar_select %p181, %s18, 0
      %s183 = sadd.s32 %s182, %s180
      %s184 = smul.addr %s183, 4
      %s185 = scalar_lea.vmem %s2, %s184
      %s186 = smul.u32 32, %s17
      %v188 = vld [vmem:[%s172] sm:$0xff]
      %v189 = vld [vmem:[%s172 + $0x8] sm:$0xff]
      %v190 = vld [vmem:[%s172 + $0x10] sm:$0xff]
      %v191 = vld [vmem:[%s172 + $0x18] sm:$0xff]
      %v192 = vld [vmem:[%s172 + $0x20] sm:$0xff]
      %v193 = vld [vmem:[%s172 + $0x28] sm:$0xff]
      %v194 = vld [vmem:[%s172 + $0x30] sm:$0xff]
      %v195 = vld [vmem:[%s172 + $0x38] sm:$0xff]
      %v196 = vld [vmem:[%s172 + $0x40] sm:$0xff]
      %v197 = vld [vmem:[%s172 + $0x48] sm:$0xff]
      %v198 = vld [vmem:[%s172 + $0x50] sm:$0xff]
      %v199 = vld [vmem:[%s172 + $0x58] sm:$0xff]
      %v200 = vld [vmem:[%s172 + $0x60] sm:$0xff]
      %v201 = vld [vmem:[%s172 + $0x68] sm:$0xff]
      %v202 = vld [vmem:[%s172 + $0x70] sm:$0xff]
      %v203 = vld [vmem:[%s172 + $0x78] sm:$0xff]
      %v204 = vld [vmem:[%s172 + $0x80] sm:$0xff]
      %v205 = vld [vmem:[%s172 + $0x88] sm:$0xff]
      %v206 = vld [vmem:[%s172 + $0x90] sm:$0xff]
      %v207 = vld [vmem:[%s172 + $0x98] sm:$0xff]
      %v208 = vld [vmem:[%s172 + $0xa0] sm:$0xff]
      %v209 = vld [vmem:[%s172 + $0xa8] sm:$0xff]
      %v210 = vld [vmem:[%s172 + $0xb0] sm:$0xff]
      %v211 = vld [vmem:[%s172 + $0xb8] sm:$0xff]
      %v212 = vld [vmem:[%s172 + $0xc0] sm:$0xff]
      %v213 = vld [vmem:[%s172 + $0xc8] sm:$0xff]
      %v214 = vld [vmem:[%s172 + $0xd0] sm:$0xff]
      %v215 = vld [vmem:[%s172 + $0xd8] sm:$0xff]
      %v216 = vld [vmem:[%s172 + $0xe0] sm:$0xff]
      %v217 = vld [vmem:[%s172 + $0xe8] sm:$0xff]
      %v218 = vld [vmem:[%s172 + $0xf0] sm:$0xff]
      %v219 = vld [vmem:[%s172 + $0xf8] sm:$0xff]
      %v220 = vlaneseq
      %v221 = vand.u32 %v220, 127
      %v222 = vadd.s32 %v221, 128
      %vm223 = vcmp.lt.s32.totalorder %v221, 147
      %vm224 = vcmp.lt.s32.totalorder %v222, 147
      %vm225 = vmpackc.low %vm224, %vm223
      %v226 = vsel %vm225, %v188, 0
      %v227 = vsel %vm225, %v189, 0
      %v228 = vsel %vm225, %v190, 0
      %v229 = vsel %vm225, %v191, 0
      %v230 = vsel %vm225, %v192, 0
      %v231 = vsel %vm225, %v193, 0
      %v232 = vsel %vm225, %v194, 0
      %v233 = vsel %vm225, %v195, 0
      %v234 = vsel %vm225, %v196, 0
      %v235 = vsel %vm225, %v197, 0
      %v236 = vsel %vm225, %v198, 0
      %v237 = vsel %vm225, %v199, 0
      %v238 = vsel %vm225, %v200, 0
      %v239 = vsel %vm225, %v201, 0
      %v240 = vsel %vm225, %v202, 0
      %v241 = vsel %vm225, %v203, 0
      %v242 = vsel %vm225, %v204, 0
      %v243 = vsel %vm225, %v205, 0
      %v244 = vsel %vm225, %v206, 0
      %v245 = vsel %vm225, %v207, 0
      %v246 = vsel %vm225, %v208, 0
      %v247 = vsel %vm225, %v209, 0
      %v248 = vsel %vm225, %v210, 0
      %v249 = vsel %vm225, %v211, 0
      %v250 = vsel %vm225, %v212, 0
      %v251 = vsel %vm225, %v213, 0
      %v252 = vsel %vm225, %v214, 0
      %v253 = vsel %vm225, %v215, 0
      %v254 = vsel %vm225, %v216, 0
      %v255 = vsel %vm225, %v217, 0
      %v256 = vsel %vm225, %v218, 0
      %v257 = vsel %vm225, %v219, 0
      %v258 = vld [vmem:[%s177] sm:$0xf]
      %v259 = vld [vmem:[%s177 + $0x4] sm:$0xf]
      %v260 = vld [vmem:[%s177 + $0x8] sm:$0xf]
      %v261 = vld [vmem:[%s177 + $0xc] sm:$0xf]
      %v262 = vld [vmem:[%s177 + $0x10] sm:$0xf]
      %v263 = vld [vmem:[%s177 + $0x14] sm:$0xf]
      %v264 = vld [vmem:[%s177 + $0x18] sm:$0xf]
      %v265 = vld [vmem:[%s177 + $0x1c] sm:$0xf]
      %v266 = vld [vmem:[%s177 + $0x20] sm:$0xf]
      %v267 = vld [vmem:[%s177 + $0x24] sm:$0xf]
      %v268 = vld [vmem:[%s177 + $0x28] sm:$0xf]
      %v269 = vld [vmem:[%s177 + $0x2c] sm:$0xf]
      %v270 = vld [vmem:[%s177 + $0x30] sm:$0xf]
      %v271 = vld [vmem:[%s177 + $0x34] sm:$0xf]
      %v272 = vld [vmem:[%s177 + $0x38] sm:$0xf]
      %v273 = vld [vmem:[%s177 + $0x3c] sm:$0xf]
      %v274 = vld [vmem:[%s177 + $0x40] sm:$0xf]
      %v275 = vld [vmem:[%s177 + $0x44] sm:$0xf]
      %v276 = vld [vmem:[%s177 + $0x48] sm:$0xf]
      %v277 = vld [vmem:[%s177 + $0x4c] sm:$0xf]
      %v278 = vld [vmem:[%s177 + $0x50] sm:$0xf]
      %v279 = vld [vmem:[%s177 + $0x54] sm:$0xf]
      %v280 = vld [vmem:[%s177 + $0x58] sm:$0xf]
      %v281 = vld [vmem:[%s177 + $0x5c] sm:$0xf]
      %v282 = vld [vmem:[%s177 + $0x60] sm:$0xf]
      %v283 = vld [vmem:[%s177 + $0x64] sm:$0xf]
      %v284 = vld [vmem:[%s177 + $0x68] sm:$0xf]
      %v285 = vld [vmem:[%s177 + $0x6c] sm:$0xf]
      %v286 = vld [vmem:[%s177 + $0x70] sm:$0xf]
      %v287 = vld [vmem:[%s177 + $0x74] sm:$0xf]
      %v288 = vld [vmem:[%s177 + $0x78] sm:$0xf]
      %v289 = vld [vmem:[%s177 + $0x7c] sm:$0xf]
      %v322 = vunpack.c.l.b16 %v226
      %v323 = vunpack.c.h.b16 %v226
      %v324 = vunpack.c.l.b16 %v227
      %v325 = vunpack.c.h.b16 %v227
      %v326 = vunpack.c.l.b16 %v228
      %v327 = vunpack.c.h.b16 %v228
      %v328 = vunpack.c.l.b16 %v229
      %v329 = vunpack.c.h.b16 %v229
      %v330 = vunpack.c.l.b16 %v230
      %v331 = vunpack.c.h.b16 %v230
      %v332 = vunpack.c.l.b16 %v231
      %v333 = vunpack.c.h.b16 %v231
      %v334 = vunpack.c.l.b16 %v232
      %v335 = vunpack.c.h.b16 %v232
      %v336 = vunpack.c.l.b16 %v233
      %v337 = vunpack.c.h.b16 %v233
      %v338 = vunpack.c.l.b16 %v234
      %v339 = vunpack.c.h.b16 %v234
      %v340 = vunpack.c.l.b16 %v235
      %v341 = vunpack.c.h.b16 %v235
      %v342 = vunpack.c.l.b16 %v236
      %v343 = vunpack.c.h.b16 %v236
      %v344 = vunpack.c.l.b16 %v237
      %v345 = vunpack.c.h.b16 %v237
      %v346 = vunpack.c.l.b16 %v238
      %v347 = vunpack.c.h.b16 %v238
      %v348 = vunpack.c.l.b16 %v239
      %v349 = vunpack.c.h.b16 %v239
      %v350 = vunpack.c.l.b16 %v240
      %v351 = vunpack.c.h.b16 %v240
      %v352 = vunpack.c.l.b16 %v241
      %v353 = vunpack.c.h.b16 %v241
      %v354 = vunpack.c.l.b16 %v242
      %v355 = vunpack.c.h.b16 %v242
      %v356 = vunpack.c.l.b16 %v243
      %v357 = vunpack.c.h.b16 %v243
      %v358 = vunpack.c.l.b16 %v244
      %v359 = vunpack.c.h.b16 %v244
      %v360 = vunpack.c.l.b16 %v245
      %v361 = vunpack.c.h.b16 %v245
      %v362 = vunpack.c.l.b16 %v246
      %v363 = vunpack.c.h.b16 %v246
      %v364 = vunpack.c.l.b16 %v247
      %v365 = vunpack.c.h.b16 %v247
      %v366 = vunpack.c.l.b16 %v248
      %v367 = vunpack.c.h.b16 %v248
      %v368 = vunpack.c.l.b16 %v249
      %v369 = vunpack.c.h.b16 %v249
      %v370 = vunpack.c.l.b16 %v250
      %v371 = vunpack.c.h.b16 %v250
      %v372 = vunpack.c.l.b16 %v251
      %v373 = vunpack.c.h.b16 %v251
      %v374 = vunpack.c.l.b16 %v252
      %v375 = vunpack.c.h.b16 %v252
      %v376 = vunpack.c.l.b16 %v253
      %v377 = vunpack.c.h.b16 %v253
      %v378 = vunpack.c.l.b16 %v254
      %v379 = vunpack.c.h.b16 %v254
      %v380 = vunpack.c.l.b16 %v255
      %v381 = vunpack.c.h.b16 %v255
      %v382 = vunpack.c.l.b16 %v256
      %v383 = vunpack.c.h.b16 %v256
      %v384 = vunpack.c.l.b16 %v257
      %v385 = vunpack.c.h.b16 %v257
      %v386 = vpack.c.b16 %v324, %v322
      %v387 = vpack.c.b16 %v325, %v323
      %v388 = vpack.c.b16 %v328, %v326
      %v389 = vpack.c.b16 %v329, %v327
      %v390 = vpack.c.b16 %v332, %v330
      %v391 = vpack.c.b16 %v333, %v331
      %v392 = vpack.c.b16 %v336, %v334
      %v393 = vpack.c.b16 %v337, %v335
      %v394 = vpack.c.b16 %v340, %v338
      %v395 = vpack.c.b16 %v341, %v339
      %v396 = vpack.c.b16 %v344, %v342
      %v397 = vpack.c.b16 %v345, %v343
      %v398 = vpack.c.b16 %v348, %v346
      %v399 = vpack.c.b16 %v349, %v347
      %v400 = vpack.c.b16 %v352, %v350
      %v401 = vpack.c.b16 %v353, %v351
      %v402 = vpack.c.b16 %v356, %v354
      %v403 = vpack.c.b16 %v357, %v355
      %v404 = vpack.c.b16 %v360, %v358
      %v405 = vpack.c.b16 %v361, %v359
      %v406 = vpack.c.b16 %v364, %v362
      %v407 = vpack.c.b16 %v365, %v363
      %v408 = vpack.c.b16 %v368, %v366
      %v409 = vpack.c.b16 %v369, %v367
      %v410 = vpack.c.b16 %v372, %v370
      %v411 = vpack.c.b16 %v373, %v371
      %v412 = vpack.c.b16 %v376, %v374
      %v413 = vpack.c.b16 %v377, %v375
      %v414 = vpack.c.b16 %v380, %v378
      %v415 = vpack.c.b16 %v381, %v379
      %v416 = vpack.c.b16 %v384, %v382
      %v417 = vpack.c.b16 %v385, %v383
      %v482 = vunpack.c.l.b16 %v258
      %v483 = vunpack.c.l.b16 %v259
      %v484 = vunpack.c.l.b16 %v260
      %v485 = vunpack.c.l.b16 %v261
      %v486 = vunpack.c.l.b16 %v262
      %v487 = vunpack.c.l.b16 %v263
      %v488 = vunpack.c.l.b16 %v264
      %v489 = vunpack.c.l.b16 %v265
      %v490 = vunpack.c.l.b16 %v266
      %v491 = vunpack.c.l.b16 %v267
      %v492 = vunpack.c.l.b16 %v268
      %v493 = vunpack.c.l.b16 %v269
      %v494 = vunpack.c.l.b16 %v270
      %v495 = vunpack.c.l.b16 %v271
      %v496 = vunpack.c.l.b16 %v272
      %v497 = vunpack.c.l.b16 %v273
      %v498 = vunpack.c.l.b16 %v274
      %v499 = vunpack.c.l.b16 %v275
      %v500 = vunpack.c.l.b16 %v276
      %v501 = vunpack.c.l.b16 %v277
      %v502 = vunpack.c.l.b16 %v278
      %v503 = vunpack.c.l.b16 %v279
      %v504 = vunpack.c.l.b16 %v280
      %v505 = vunpack.c.l.b16 %v281
      %v506 = vunpack.c.l.b16 %v282
      %v507 = vunpack.c.l.b16 %v283
      %v508 = vunpack.c.l.b16 %v284
      %v509 = vunpack.c.l.b16 %v285
      %v510 = vunpack.c.l.b16 %v286
      %v511 = vunpack.c.l.b16 %v287
      %v512 = vunpack.c.l.b16 %v288
      %v513 = vunpack.c.l.b16 %v289
      %v514 = vpack.c.b16 %v483, %v482
      %v515 = vpack.c.b16 %v485, %v484
      %v516 = vpack.c.b16 %v487, %v486
      %v517 = vpack.c.b16 %v489, %v488
      %v518 = vpack.c.b16 %v491, %v490
      %v519 = vpack.c.b16 %v493, %v492
      %v520 = vpack.c.b16 %v495, %v494
      %v521 = vpack.c.b16 %v497, %v496
      %v522 = vpack.c.b16 %v499, %v498
      %v523 = vpack.c.b16 %v501, %v500
      %v524 = vpack.c.b16 %v503, %v502
      %v525 = vpack.c.b16 %v505, %v504
      %v526 = vpack.c.b16 %v507, %v506
      %v527 = vpack.c.b16 %v509, %v508
      %v528 = vpack.c.b16 %v511, %v510
      %v529 = vpack.c.b16 %v513, %v512
      %546 = vmatpush.bf16.msra.mxu0 %v521
      %547 = vmatpush.bf16.msra.mxu0 %v520
      %548 = vmatpush.bf16.msra.mxu0 %v519
      %549 = vmatpush.bf16.msra.mxu0 %v518
      %550 = vmatpush.bf16.msra.mxu0 %v517
      %551 = vmatpush.bf16.msra.mxu0 %v516
      %552 = vmatpush.bf16.msra.mxu0 %v515
      %553 = vmatpush.bf16.msra.mxu0 %v514
      %554 = vmatmul.bf16.gmra.mxu0 %v386
      %v555 = vpop.f32.mrf.mxu0
      %v556 = vadd.f32 0.0, %v555
      %v557 = vpop.f32.mrf.mxu0
      %v558 = vadd.f32 0.0, %v557
      %559 = vmatmul.bf16.gmra.mxu0 %v388
      %v560 = vpop.f32.mrf.mxu0
      %v561 = vadd.f32 0.0, %v560
      %v562 = vpop.f32.mrf.mxu0
      %v563 = vadd.f32 0.0, %v562
      %564 = vmatmul.bf16.gmra.mxu0 %v390
      %v565 = vpop.f32.mrf.mxu0
      %v566 = vadd.f32 0.0, %v565
      %v567 = vpop.f32.mrf.mxu0
      %v568 = vadd.f32 0.0, %v567
      %569 = vmatmul.bf16.gmra.mxu0 %v392
      %v570 = vpop.f32.mrf.mxu0
      %v571 = vadd.f32 0.0, %v570
      %v572 = vpop.f32.mrf.mxu0
      %v573 = vadd.f32 0.0, %v572
      %574 = vmatmul.bf16.gmra.mxu0 %v394
      %v575 = vpop.f32.mrf.mxu0
      %v576 = vadd.f32 0.0, %v575
      %v577 = vpop.f32.mrf.mxu0
      %v578 = vadd.f32 0.0, %v577
      %579 = vmatmul.bf16.gmra.mxu0 %v396
      %v580 = vpop.f32.mrf.mxu0
      %v581 = vadd.f32 0.0, %v580
      %v582 = vpop.f32.mrf.mxu0
      %v583 = vadd.f32 0.0, %v582
      %584 = vmatmul.bf16.gmra.mxu0 %v398
      %v585 = vpop.f32.mrf.mxu0
      %v586 = vadd.f32 0.0, %v585
      %v587 = vpop.f32.mrf.mxu0
      %v588 = vadd.f32 0.0, %v587
      %589 = vmatmul.bf16.gmra.mxu0 %v400
      %v590 = vpop.f32.mrf.mxu0
      %v591 = vadd.f32 0.0, %v590
      %v592 = vpop.f32.mrf.mxu0
      %v593 = vadd.f32 0.0, %v592
      %594 = vmatmul.bf16.gmra.mxu0 %v402
      %v595 = vpop.f32.mrf.mxu0
      %v596 = vadd.f32 0.0, %v595
      %v597 = vpop.f32.mrf.mxu0
      %v598 = vadd.f32 0.0, %v597
      %599 = vmatmul.bf16.gmra.mxu0 %v404
      %v600 = vpop.f32.mrf.mxu0
      %v601 = vadd.f32 0.0, %v600
      %v602 = vpop.f32.mrf.mxu0
      %v603 = vadd.f32 0.0, %v602
      %604 = vmatmul.bf16.gmra.mxu0 %v406
      %v605 = vpop.f32.mrf.mxu0
      %v606 = vadd.f32 0.0, %v605
      %v607 = vpop.f32.mrf.mxu0
      %v608 = vadd.f32 0.0, %v607
      %609 = vmatmul.bf16.gmra.mxu0 %v408
      %v610 = vpop.f32.mrf.mxu0
      %v611 = vadd.f32 0.0, %v610
      %v612 = vpop.f32.mrf.mxu0
      %v613 = vadd.f32 0.0, %v612
      %614 = vmatmul.bf16.gmra.mxu0 %v410
      %v615 = vpop.f32.mrf.mxu0
      %v616 = vadd.f32 0.0, %v615
      %v617 = vpop.f32.mrf.mxu0
      %v618 = vadd.f32 0.0, %v617
      %619 = vmatmul.bf16.gmra.mxu0 %v412
      %v620 = vpop.f32.mrf.mxu0
      %v621 = vadd.f32 0.0, %v620
      %v622 = vpop.f32.mrf.mxu0
      %v623 = vadd.f32 0.0, %v622
      %624 = vmatmul.bf16.gmra.mxu0 %v414
      %v625 = vpop.f32.mrf.mxu0
      %v626 = vadd.f32 0.0, %v625
      %v627 = vpop.f32.mrf.mxu0
      %v628 = vadd.f32 0.0, %v627
      %629 = vmatmul.bf16.gmra.mxu0 %v416
      %v630 = vpop.f32.mrf.mxu0
      %v631 = vadd.f32 0.0, %v630
      %v632 = vpop.f32.mrf.mxu0
      %v633 = vadd.f32 0.0, %v632
      %634 = vdwg.mxu0
      %635 = vmatpush.bf16.msra.mxu0 %v529
      %636 = vmatpush.bf16.msra.mxu0 %v528
      %637 = vmatpush.bf16.msra.mxu0 %v527
      %638 = vmatpush.bf16.msra.mxu0 %v526
      %639 = vmatpush.bf16.msra.mxu0 %v525
      %640 = vmatpush.bf16.msra.mxu0 %v524
      %641 = vmatpush.bf16.msra.mxu0 %v523
      %642 = vmatpush.bf16.msra.mxu0 %v522
      %643 = vmatmul.bf16.gmra.mxu0 %v387
      %v644 = vpop.f32.mrf.mxu0
      %v645 = vadd.f32 %v556, %v644
      %v646 = vpop.f32.mrf.mxu0
      %v647 = vadd.f32 %v558, %v646
      %648 = vmatmul.bf16.gmra.mxu0 %v389
      %v649 = vpop.f32.mrf.mxu0
      %v650 = vadd.f32 %v561, %v649
      %v651 = vpop.f32.mrf.mxu0
      %v652 = vadd.f32 %v563, %v651
      %653 = vmatmul.bf16.gmra.mxu0 %v391
      %v654 = vpop.f32.mrf.mxu0
      %v655 = vadd.f32 %v566, %v654
      %v656 = vpop.f32.mrf.mxu0
      %v657 = vadd.f32 %v568, %v656
      %658 = vmatmul.bf16.gmra.mxu0 %v393
      %v659 = vpop.f32.mrf.mxu0
      %v660 = vadd.f32 %v571, %v659
      %v661 = vpop.f32.mrf.mxu0
      %v662 = vadd.f32 %v573, %v661
      %663 = vmatmul.bf16.gmra.mxu0 %v395
      %v664 = vpop.f32.mrf.mxu0
      %v665 = vadd.f32 %v576, %v664
      %v666 = vpop.f32.mrf.mxu0
      %v667 = vadd.f32 %v578, %v666
      %668 = vmatmul.bf16.gmra.mxu0 %v397
      %v669 = vpop.f32.mrf.mxu0
      %v670 = vadd.f32 %v581, %v669
      %v671 = vpop.f32.mrf.mxu0
      %v672 = vadd.f32 %v583, %v671
      %673 = vmatmul.bf16.gmra.mxu0 %v399
      %v674 = vpop.f32.mrf.mxu0
      %v675 = vadd.f32 %v586, %v674
      %v676 = vpop.f32.mrf.mxu0
      %v677 = vadd.f32 %v588, %v676
      %678 = vmatmul.bf16.gmra.mxu0 %v401
      %v679 = vpop.f32.mrf.mxu0
      %v680 = vadd.f32 %v591, %v679
      %v681 = vpop.f32.mrf.mxu0
      %v682 = vadd.f32 %v593, %v681
      %683 = vmatmul.bf16.gmra.mxu0 %v403
      %v684 = vpop.f32.mrf.mxu0
      %v685 = vadd.f32 %v596, %v684
      %v686 = vpop.f32.mrf.mxu0
      %v687 = vadd.f32 %v598, %v686
      %688 = vmatmul.bf16.gmra.mxu0 %v405
      %v689 = vpop.f32.mrf.mxu0
      %v690 = vadd.f32 %v601, %v689
      %v691 = vpop.f32.mrf.mxu0
      %v692 = vadd.f32 %v603, %v691
      %693 = vmatmul.bf16.gmra.mxu0 %v407
      %v694 = vpop.f32.mrf.mxu0
      %v695 = vadd.f32 %v606, %v694
      %v696 = vpop.f32.mrf.mxu0
      %v697 = vadd.f32 %v608, %v696
      %698 = vmatmul.bf16.gmra.mxu0 %v409
      %v699 = vpop.f32.mrf.mxu0
      %v700 = vadd.f32 %v611, %v699
      %v701 = vpop.f32.mrf.mxu0
      %v702 = vadd.f32 %v613, %v701
      %703 = vmatmul.bf16.gmra.mxu0 %v411
      %v704 = vpop.f32.mrf.mxu0
      %v705 = vadd.f32 %v616, %v704
      %v706 = vpop.f32.mrf.mxu0
      %v707 = vadd.f32 %v618, %v706
      %708 = vmatmul.bf16.gmra.mxu0 %v413
      %v709 = vpop.f32.mrf.mxu0
      %v710 = vadd.f32 %v621, %v709
      %v711 = vpop.f32.mrf.mxu0
      %v712 = vadd.f32 %v623, %v711
      %713 = vmatmul.bf16.gmra.mxu0 %v415
      %v714 = vpop.f32.mrf.mxu0
      %v715 = vadd.f32 %v626, %v714
      %v716 = vpop.f32.mrf.mxu0
      %v717 = vadd.f32 %v628, %v716
      %718 = vmatmul.bf16.gmra.mxu0 %v417
      %v719 = vpop.f32.mrf.mxu0
      %v720 = vadd.f32 %v631, %v719
      %v721 = vpop.f32.mrf.mxu0
      %v722 = vadd.f32 %v633, %v721
      %723 = vdwg.mxu0
      %v724 = vpack.c.bf16 %v645, %v645
      %v725 = vpack.c.bf16 %v647, %v647
      %v726 = vpack.c.bf16 %v650, %v650
      %v727 = vpack.c.bf16 %v652, %v652
      %v728 = vpack.c.bf16 %v655, %v655
      %v729 = vpack.c.bf16 %v657, %v657
      %v730 = vpack.c.bf16 %v660, %v660
      %v731 = vpack.c.bf16 %v662, %v662
      %v732 = vpack.c.bf16 %v665, %v665
      %v733 = vpack.c.bf16 %v667, %v667
      %v734 = vpack.c.bf16 %v670, %v670
      %v735 = vpack.c.bf16 %v672, %v672
      %v736 = vpack.c.bf16 %v675, %v675
      %v737 = vpack.c.bf16 %v677, %v677
      %v738 = vpack.c.bf16 %v680, %v680
      %v739 = vpack.c.bf16 %v682, %v682
      %v740 = vpack.c.bf16 %v685, %v685
      %v741 = vpack.c.bf16 %v687, %v687
      %v742 = vpack.c.bf16 %v690, %v690
      %v743 = vpack.c.bf16 %v692, %v692
      %v744 = vpack.c.bf16 %v695, %v695
      %v745 = vpack.c.bf16 %v697, %v697
      %v746 = vpack.c.bf16 %v700, %v700
      %v747 = vpack.c.bf16 %v702, %v702
      %v748 = vpack.c.bf16 %v705, %v705
      %v749 = vpack.c.bf16 %v707, %v707
      %v750 = vpack.c.bf16 %v710, %v710
      %v751 = vpack.c.bf16 %v712, %v712
      %v752 = vpack.c.bf16 %v715, %v715
      %v753 = vpack.c.bf16 %v717, %v717
      %v754 = vpack.c.bf16 %v720, %v720
      %v755 = vpack.c.bf16 %v722, %v722
      %756 = vst [vmem:[%s185] sm:$0xf] %v724
      %757 = vst [vmem:[%s185 + $0x4] sm:$0xf] %v725
      %758 = vst [vmem:[%s185 + $0x8] sm:$0xf] %v726
      %759 = vst [vmem:[%s185 + $0xc] sm:$0xf] %v727
      %760 = vst [vmem:[%s185 + $0x10] sm:$0xf] %v728
      %761 = vst [vmem:[%s185 + $0x14] sm:$0xf] %v729
      %762 = vst [vmem:[%s185 + $0x18] sm:$0xf] %v730
      %763 = vst [vmem:[%s185 + $0x1c] sm:$0xf] %v731
      %764 = vst [vmem:[%s185 + $0x20] sm:$0xf] %v732
      %765 = vst [vmem:[%s185 + $0x24] sm:$0xf] %v733
      %766 = vst [vmem:[%s185 + $0x28] sm:$0xf] %v734
      %767 = vst [vmem:[%s185 + $0x2c] sm:$0xf] %v735
      %768 = vst [vmem:[%s185 + $0x30] sm:$0xf] %v736
      %769 = vst [vmem:[%s185 + $0x34] sm:$0xf] %v737
      %770 = vst [vmem:[%s185 + $0x38] sm:$0xf] %v738
      %771 = vst [vmem:[%s185 + $0x3c] sm:$0xf] %v739
      %772 = vst [vmem:[%s185 + $0x40] sm:$0xf] %v740
      %773 = vst [vmem:[%s185 + $0x44] sm:$0xf] %v741
      %774 = vst [vmem:[%s185 + $0x48] sm:$0xf] %v742
      %775 = vst [vmem:[%s185 + $0x4c] sm:$0xf] %v743
      %776 = vst [vmem:[%s185 + $0x50] sm:$0xf] %v744
      %777 = vst [vmem:[%s185 + $0x54] sm:$0xf] %v745
      %778 = vst [vmem:[%s185 + $0x58] sm:$0xf] %v746
      %779 = vst [vmem:[%s185 + $0x5c] sm:$0xf] %v747
      %780 = vst [vmem:[%s185 + $0x60] sm:$0xf] %v748
      %781 = vst [vmem:[%s185 + $0x64] sm:$0xf] %v749
      %782 = vst [vmem:[%s185 + $0x68] sm:$0xf] %v750
      %783 = vst [vmem:[%s185 + $0x6c] sm:$0xf] %v751
      %784 = vst [vmem:[%s185 + $0x70] sm:$0xf] %v752
      %785 = vst [vmem:[%s185 + $0x74] sm:$0xf] %v753
      %786 = vst [vmem:[%s185 + $0x78] sm:$0xf] %v754
      %787 = vst [vmem:[%s185 + $0x7c] sm:$0xf] %v755
      %s788 = smul.u32 32, %s17
      %p789 = scmp.lt.s32.totalorder %s788, 63
      %s790 = scalar_select %p789, %s788, 63
      %p791 = scmp.lt.s32.totalorder %s18, 0
      %s792 = scalar_select %p791, %s18, 0
      %s793 = sadd.s32 %s792, %s790
      %s794 = smul.addr %s793, 4
      %s795 = scalar_lea.vmem %s2, %s794
      // Predicated region
      $region29: #{tpu_custom_call.1} parent=27 // pred_check
        %p796 = pneg %p97
      $region30: #{tpu_custom_call.1} parent=27 // pred_check_branch
        %798 = sbr.rel (%p796) target = $region32
      $region31: #{tpu_custom_call.1} parent=27 // pred_region
        %s799 = smul.u32 32, %s17
      $region32: #{tpu_custom_call.1} parent=27 // pred_fallthru
        _
    $region28: #{tpu_custom_call.1} parent=5 // pred_fallthru
      _
    %p800 = scmp.le.s32.totalorder 2, %s8
    // Predicated region
    $region33: #{tpu_custom_call.1} parent=5 // pred_check
      %p801 = pneg %p800
    $region34: #{tpu_custom_call.1} parent=5 // pred_check_branch
      %803 = sbr.rel (%p801) target = $region36
    $region35: #{tpu_custom_call.1} parent=5 // pred_region
      %s804 = ssub.s32 %s8, 2
      // Predicated region
      $region37: #{tpu_custom_call.1} parent=35 // pred_check
        %p805 = pneg %p103
      $region38: #{tpu_custom_call.1} parent=35 // pred_check_branch
        %807 = sbr.rel (%p805) target = $region40
      $region39: #{tpu_custom_call.1} parent=35 // pred_region
        %s808 = smul.u32 32, %s19
        %p809 = scmp.lt.s32.totalorder %s808, 63
        %s810 = scalar_select %p809, %s808, 63
        %p811 = scmp.lt.s32.totalorder %s20, 0
        %s812 = scalar_select %p811, %s20, 0
        %s813 = sadd.s32 %s812, %s810
        %s814 = smul.addr %s813, 4
        %s815 = scalar_lea.vmem %s2, %s814
      $region40: #{tpu_custom_call.1} parent=35 // pred_fallthru
        _
    $region36: #{tpu_custom_call.1} parent=5 // pred_fallthru
      _
  $region6: #{tpu_custom_call.1} parent=0 // loop_footer
    %s12 = sadd.s32 1, %s8
  $region7: #{tpu_custom_call.1} parent=0 // loop_footer_branch
    %7 = sbr.rel target = $region3
  $region8: #{tpu_custom_call.1} parent=0 // loop_exit
    _

</llo_original>
